<compile_context>
chip_gen: v5e
topology: v5e:2x2
jax: 0.10.0
libtpu: 0.0.40
codegen_flags: <defaults>
</compile_context>

<pallas_src>
import jax
import jax.numpy as jnp
from jax.experimental import pallas as pl
from jax.experimental.pallas import tpu as pltpu


def attention_kernel(x_ref, w1_ref, b1_ref, w2_ref, exp_ref, o_ref):
    # x_ref:   (Bt, S*F)  lane-dense feature slab for Bt batches
    # w1_ref:  (S*F, S*A) block-diagonal first linear  = kron(I_S, W1)
    # b1_ref:  (1, S*A)   first bias tiled S times
    # w2_ref:  (S*A, S)   block-diagonal score proj    = kron(I_S, W2)   (b2 elided)
    # exp_ref: (S, S*F)   0/1 expansion: weight s -> lanes [s*F, (s+1)*F)
    # o_ref:   (Bt, S*F)

    # Hidden projection + tanh for all Bt batches in one MXU matmul.
    h = jnp.tanh(
        jnp.dot(x_ref[...], w1_ref[...], preferred_element_type=jnp.float32)
        + b1_ref[...]
    )                                                                  # (Bt, S*A) f32

    # Per-(batch, seq) scores via the block-diagonal A->1 projection.
    scores = jnp.dot(h, w2_ref[...], preferred_element_type=jnp.float32)  # (Bt, S)

    # Numerically-stable softmax over the sequence axis (lane axis of scores).
    m = jnp.max(scores, axis=-1, keepdims=True)                       # (Bt, 1)
    e = jnp.exp(scores - m)                                           # (Bt, S)
    w = e / jnp.sum(e, axis=-1, keepdims=True)                        # exact; sums to 1

    # Broadcast each sequence weight across its F feature lanes (0/1 matmul),
    # then scale the features.  x_ref is re-indexed here (cheap VMEM vld) rather
    # than keeping the loaded tile live across the whole body.
    w_full = jnp.dot(w, exp_ref[...], preferred_element_type=jnp.float32)  # (Bt, S*F)
    o_ref[...] = (x_ref[...].astype(jnp.float32) * w_full).astype(o_ref.dtype)


def attention_forward(x, w1, b1, w2, b2=None, *, block_b=None):
    """x: (B, S, F); w1: (F, A); b1: (1, A) or (A,); w2: (A, 1); b2: unused
    (softmax over the sequence is shift-invariant, so the scalar score bias is
    mathematically a no-op on the output)."""
    B, S, F = x.shape
    A = w1.shape[-1]
    del b2  # exact elision; do NOT re-add downstream.

    # Host-side precompute (tiny at these sizes): block-diagonal weights so the
    # kernel works on a lane-dense (B, S*F) view of x.
    f32 = jnp.float32
    eye_s = jnp.eye(S, dtype=f32)
    w1_bd = jnp.kron(eye_s, w1.astype(f32))                     # (S*F, S*A)
    b1_t = jnp.tile(jnp.reshape(b1, (1, A)).astype(f32), (1, S))  # (1, S*A)
    w2_bd = jnp.kron(eye_s, jnp.reshape(w2, (A, 1)).astype(f32))  # (S*A, S)
    expand = jnp.kron(eye_s, jnp.ones((1, F), dtype=f32))       # (S, S*F)

    x2 = x.reshape(B, S * F)                                    # free in HBM

    itemsize = jnp.dtype(x.dtype).itemsize
    per_batch_bytes = S * F * itemsize

    if block_b is None:
        # ~2 MiB of x per grid step: on the HBM roofline for every generation,
        # and small enough for v5e's 16 MiB scoped-VMEM default with
        # double-buffered in + out blocks plus f32 intermediates.
        cap = max(1, (2 * 1024 * 1024) // per_batch_bytes)
        if B <= 8:
            block_b = B                 # block == full dim: always a legal shape
        else:
            # Target >= 2 (prefer >= 4) grid steps so v7x megacore can split the
            # batch axis and the pipeline has DMA to hide; keep the second-minor
            # block dim a multiple of 8 (sublane-aligned).
            block_b = min(cap, max(8, B // 4))
            block_b = max(8, (block_b // 8) * 8)
    grid = (pl.cdiv(B, block_b),)       # ragged last block handled by Pallas
    # TODO(synk): for very long sequences (S*F*itemsize >> a few MiB per batch,
    # where block-diag kron weights and block_b=1 buffers blow up), tile over S
    # with a two-pass / online softmax instead.

    # Explicit VMEM budget: double-buffered x-in + out blocks, resident weights
    # (counted double-buffered), f32 intermediates, +30% headroom.
    x_tile_bytes = block_b * S * F * itemsize
    weight_bytes = 4 * (S * F * S * A + S * A + S * A * S + S * S * F)
    interm_bytes = 4 * block_b * (2 * S * F + S * A + 4 * S)
    vmem_limit = int(1.3 * (4 * x_tile_bytes + 2 * weight_bytes + interm_bytes)) + (4 << 20)
    vmem_limit = max(vmem_limit, 32 << 20)      # never below the v6e/v7x default
    vmem_limit = min(vmem_limit, 64 << 20)      # stay inside v7x physical VMEM/TC

    out2 = pl.pallas_call(
        attention_kernel,
        out_shape=jax.ShapeDtypeStruct((B, S * F), x.dtype),
        grid_spec=pltpu.PrefetchScalarGridSpec(
            num_scalar_prefetch=0,
            grid=grid,
            in_specs=[
                pl.BlockSpec((block_b, S * F), lambda b: (b, 0)),   # x (lane-dense)
                pl.BlockSpec((S * F, S * A), lambda b: (0, 0)),     # block-diag W1
                pl.BlockSpec((1, S * A), lambda b: (0, 0)),         # tiled b1
                pl.BlockSpec((S * A, S), lambda b: (0, 0)),         # block-diag W2
                pl.BlockSpec((S, S * F), lambda b: (0, 0)),         # 0/1 expansion
            ],
            out_specs=pl.BlockSpec((block_b, S * F), lambda b: (b, 0)),
        ),
        compiler_params=pltpu.CompilerParams(
            dimension_semantics=("parallel",),   # batch tiles shard across v7x TCs
            vmem_limit_bytes=vmem_limit,
        ),
    )(x2, w1_bd, b1_t, w2_bd, expand)

    return out2.reshape(B, S, F)                 # free in HBM


def attention_reference(x, w1, b1, w2, b2):
    h = jnp.tanh(jnp.einsum("bsf,fa->bsa", x, w1) + jnp.reshape(b1, (1, 1, -1)))
    scores = jnp.einsum("bsa,ao->bso", h, w2) + b2[0, 0]       # (B, S, 1)
    weights = jax.nn.softmax(scores, axis=1)
    return x * weights


if __name__ == "__main__":
    B, S, F, A = 2, 8, 32, 16   # batch, seq, feature_dim, attention_dim

    key = jax.random.PRNGKey(0)
    kx, k1, k2, k3, k4 = jax.random.split(key, 5)

    x = jax.random.normal(kx, (B, S, F), dtype=jnp.float32)
    # Deterministic parameter init (shapes from nn.Linear(F, A) and nn.Linear(A, 1)).
    w1 = jax.random.normal(k1, (F, A), dtype=jnp.float32) * (1.0 / F) ** 0.5
    b1 = jax.random.normal(k2, (1, A), dtype=jnp.float32) * 0.01
    w2 = jax.random.normal(k3, (A, 1), dtype=jnp.float32) * (1.0 / A) ** 0.5
    b2 = jax.random.normal(k4, (1, 1), dtype=jnp.float32) * 0.01

    out = attention_forward(x, w1, b1, w2, b2)
    out = jax.block_until_ready(out)

    ref = attention_reference(x, w1, b1, w2, b2)
    assert out.shape == (B, S, F)
    assert jnp.allclose(out, ref, atol=2e-3, rtol=2e-3), float(jnp.max(jnp.abs(out - ref)))

    print("KERNEL_OK")
</pallas_src>

<mosaic_0001>
module attributes {stable_mosaic.version = 11 : i64} {
  func.func @attention_kernel(%arg0: i32, %arg1: memref<2x256xf32, #tpu.memory_space<vmem>>, %arg2: memref<256x128xf32, #tpu.memory_space<vmem>>, %arg3: memref<1x128xf32, #tpu.memory_space<vmem>>, %arg4: memref<128x8xf32, #tpu.memory_space<vmem>>, %arg5: memref<8x256xf32, #tpu.memory_space<vmem>>, %arg6: memref<2x256xf32, #tpu.memory_space<vmem>>) attributes {dimension_semantics = [#tpu.dimension_semantics<parallel>], iteration_bounds = array<i64: 1>, scalar_prefetch = 0 : i64, scratch_operands = 0 : i64, tpu.core_type = #tpu.core_type<tc>, window_params = [{transform_indices = @transform_0, window_bounds = array<i64: 2, 256>}, {pipeline_mode = #tpu.pipeline_mode<synchronous>, transform_indices = @transform_1, window_bounds = array<i64: 256, 128>}, {pipeline_mode = #tpu.pipeline_mode<synchronous>, transform_indices = @transform_2, window_bounds = array<i64: 1, 128>}, {pipeline_mode = #tpu.pipeline_mode<synchronous>, transform_indices = @transform_3, window_bounds = array<i64: 128, 8>}, {pipeline_mode = #tpu.pipeline_mode<synchronous>, transform_indices = @transform_4, window_bounds = array<i64: 8, 256>}, {transform_indices = @transform_5, window_bounds = array<i64: 2, 256>}]} {
    %c0 = arith.constant 0 : index
    %c0_0 = arith.constant 0 : index
    %0 = vector.load %arg1[%c0, %c0_0] : memref<2x256xf32, #tpu.memory_space<vmem>>, vector<2x256xf32>
    %c0_1 = arith.constant 0 : index
    %c0_2 = arith.constant 0 : index
    %1 = vector.load %arg2[%c0_1, %c0_2] : memref<256x128xf32, #tpu.memory_space<vmem>>, vector<256x128xf32>
    %cst = arith.constant dense<0.000000e+00> : vector<2x128xf32>
    %2 = tpu.matmul %0, %1, %cst {dimension_numbers = #tpu.dot_dimension_numbers<[1], [0], [0], [1], [0, 0, 1, 1], [], []>} : vector<2x256xf32>, vector<256x128xf32>, vector<2x128xf32> -> vector<2x128xf32>
    %c0_3 = arith.constant 0 : index
    %c0_4 = arith.constant 0 : index
    %3 = vector.load %arg3[%c0_3, %c0_4] : memref<1x128xf32, #tpu.memory_space<vmem>>, vector<1x128xf32>
    %4 = vector.broadcast %3 : vector<1x128xf32> to vector<2x128xf32>
    %5 = arith.addf %2, %4 : vector<2x128xf32>
    %6 = math.tanh %5 : vector<2x128xf32>
    %c0_5 = arith.constant 0 : index
    %c0_6 = arith.constant 0 : index
    %7 = vector.load %arg4[%c0_5, %c0_6] : memref<128x8xf32, #tpu.memory_space<vmem>>, vector<128x8xf32>
    %cst_7 = arith.constant dense<0.000000e+00> : vector<2x8xf32>
    %8 = tpu.matmul %6, %7, %cst_7 {dimension_numbers = #tpu.dot_dimension_numbers<[1], [0], [0], [1], [0, 0, 1, 1], [], []>} : vector<2x128xf32>, vector<128x8xf32>, vector<2x8xf32> -> vector<2x8xf32>
    %cst_8 = arith.constant dense<0xFF800000> : vector<2xf32>
    %9 = vector.multi_reduction <maximumf>, %8, %cst_8 [1] : vector<2x8xf32> to vector<2xf32>
    %10 = vector.shape_cast %9 : vector<2xf32> to vector<2x1xf32>
    %11 = vector.broadcast %10 : vector<2x1xf32> to vector<2x8xf32>
    %12 = arith.subf %8, %11 : vector<2x8xf32>
    %13 = math.exp %12 : vector<2x8xf32>
    %cst_9 = arith.constant dense<0.000000e+00> : vector<2xf32>
    %14 = vector.multi_reduction <add>, %13, %cst_9 [1] : vector<2x8xf32> to vector<2xf32>
    %15 = vector.shape_cast %14 : vector<2xf32> to vector<2x1xf32>
    %16 = vector.broadcast %15 : vector<2x1xf32> to vector<2x8xf32>
    %17 = arith.divf %13, %16 : vector<2x8xf32>
    %c0_10 = arith.constant 0 : index
    %c0_11 = arith.constant 0 : index
    %18 = vector.load %arg5[%c0_10, %c0_11] : memref<8x256xf32, #tpu.memory_space<vmem>>, vector<8x256xf32>
    %cst_12 = arith.constant dense<0.000000e+00> : vector<2x256xf32>
    %19 = tpu.matmul %17, %18, %cst_12 {dimension_numbers = #tpu.dot_dimension_numbers<[1], [0], [0], [1], [0, 0, 1, 1], [], []>} : vector<2x8xf32>, vector<8x256xf32>, vector<2x256xf32> -> vector<2x256xf32>
    %c0_13 = arith.constant 0 : index
    %c0_14 = arith.constant 0 : index
    %20 = vector.load %arg1[%c0_13, %c0_14] : memref<2x256xf32, #tpu.memory_space<vmem>>, vector<2x256xf32>
    %21 = arith.mulf %20, %19 : vector<2x256xf32>
    %c0_15 = arith.constant 0 : index
    %c0_16 = arith.constant 0 : index
    %22 = vector.load %arg6[%c0_15, %c0_16] : memref<2x256xf32, #tpu.memory_space<vmem>>, vector<2x256xf32>
    tpu.vector_store %arg6[%c0_15, %c0_16], %21 {strides = array<i32>} : memref<2x256xf32, #tpu.memory_space<vmem>>, vector<2x256xf32>,
    return
  }
  func.func @transform_0(%arg0: i32) -> (i32, i32) {
    %c0_i32 = arith.constant 0 : i32
    %c0_i32_0 = arith.constant 0 : i32
    return %arg0, %c0_i32 : i32, i32
  }
  func.func @transform_1(%arg0: i32) -> (i32, i32) {
    %c0_i32 = arith.constant 0 : i32
    %c0_i32_0 = arith.constant 0 : i32
    %c0_i32_1 = arith.constant 0 : i32
    return %c0_i32, %c0_i32_0 : i32, i32
  }
  func.func @transform_2(%arg0: i32) -> (i32, i32) {
    %c0_i32 = arith.constant 0 : i32
    %c0_i32_0 = arith.constant 0 : i32
    %c0_i32_1 = arith.constant 0 : i32
    return %c0_i32, %c0_i32_0 : i32, i32
  }
  func.func @transform_3(%arg0: i32) -> (i32, i32) {
    %c0_i32 = arith.constant 0 : i32
    %c0_i32_0 = arith.constant 0 : i32
    %c0_i32_1 = arith.constant 0 : i32
    return %c0_i32, %c0_i32_0 : i32, i32
  }
  func.func @transform_4(%arg0: i32) -> (i32, i32) {
    %c0_i32 = arith.constant 0 : i32
    %c0_i32_0 = arith.constant 0 : i32
    %c0_i32_1 = arith.constant 0 : i32
    return %c0_i32, %c0_i32_0 : i32, i32
  }
  func.func @transform_5(%arg0: i32) -> (i32, i32) {
    %c0_i32 = arith.constant 0 : i32
    %c0_i32_0 = arith.constant 0 : i32
    return %arg0, %c0_i32 : i32, i32
  }
}

</mosaic_0001>

<llo_original>
// kernel: tpu_custom_call.1
$region0: #{tpu_custom_call.1}
  #allocation0 [shape = 'u32[]', space=smem, size = 0x4, offset = 0x4, fixed_abs, tag = 'smem constant byte address 0x4 - core index']
  #allocation1 [shape = 'u32[72,128]{1,0:T(1,128)}', space=vmem, size = 0x9000, scoped, tag = 'internal scratch']
  %s0 = inlined_call_operand.vmem [shape: f32[2,256], index: 0, kind: input, shape index: {}]
  %s1 = inlined_call_operand.hbm [shape: f32[256,128], index: 1, kind: input, shape index: {}]
  %s2 = inlined_call_operand.vmem [shape: f32[1,128], index: 2, kind: input, shape index: {}]
  %s3 = inlined_call_operand.vmem [shape: f32[128,8], index: 3, kind: input, shape index: {}]
  %s4 = inlined_call_operand.vmem [shape: f32[8,256], index: 4, kind: input, shape index: {}]
  %s5 = inlined_call_operand.hbm [shape: f32[2,256], index: 5, kind: output, shape index: {}]
  %s6 = sld [smem:[#allocation0]]
  $region34: #{tpu_custom_call.1} parent=0
    _
  %s8 = ssub.s32 1, %s6
  %s9 = scalar_select 0, %s8, %s6
  $region1: #{tpu_custom_call.1} parent=0
    #allocation2 [shape = 'u8[131072]{0}', space=vmem, size = 0x20000, scoped, tag = 'input window, operand 1, single buffered']
    #allocation3 [shape = 's32[1]{0}', space=sflag, size = 0x4, scoped, tag = 'scoped memory for tpu_custom_call.1']
    #allocation4 [shape = 's32[1]{0}', space=sflag, size = 0x4, scoped, tag = 'scoped memory for tpu_custom_call.1']
    #allocation5 [shape = 'u8[2048]{0}', space=vmem, size = 0x800, scoped, tag = 'output window, operand 0, single buffered']
    %10 = vsyncpa [#allocation3], 0
    %11 = vsyncpa [#allocation4], 0
    // Predicated region
    $region2: #{tpu_custom_call.1} parent=1 // pred_check
      _
    $region3: #{tpu_custom_call.1} parent=1 // pred_check_branch
      %13 = sbr.rel (0) target = $region5
    $region4: #{tpu_custom_call.1} parent=1 // pred_region
      _
    $region5: #{tpu_custom_call.1} parent=1 // pred_fallthru
      _
    // Predicated region
    $region6: #{tpu_custom_call.1} parent=1 // pred_check
      _
    $region7: #{tpu_custom_call.1} parent=1 // pred_check_branch
      %15 = sbr.rel (0) target = $region9
    $region8: #{tpu_custom_call.1} parent=1 // pred_region
      %17 = vsyncadd [#allocation3], 0
      %s18 = sshll.u32 %s1, 4
      %s19 = int_to_ptr.hbm [resolvable:$true] %s18
      %s20 = sshll.u32 [#allocation2], 4
      %s21 = int_to_ptr.vmem [resolvable:$true] %s20
      %26 = dma.hbm_to_vmem [thread:$0]  %s19, 4096, %s21, [#allocation3], 128, 128, 8
    $region9: #{tpu_custom_call.1} parent=1 // pred_fallthru
      _
    // Predicated region
    $region10: #{tpu_custom_call.1} parent=1 // pred_check
      _
    $region11: #{tpu_custom_call.1} parent=1 // pred_check_branch
      %28 = sbr.rel (0) target = $region13
    $region12: #{tpu_custom_call.1} parent=1 // pred_region
      _
    $region13: #{tpu_custom_call.1} parent=1 // pred_fallthru
      _
    // Predicated region
    $region14: #{tpu_custom_call.1} parent=1 // pred_check
      _
    $region15: #{tpu_custom_call.1} parent=1 // pred_check_branch
      %30 = sbr.rel (0) target = $region17
    $region16: #{tpu_custom_call.1} parent=1 // pred_region
      _
    $region17: #{tpu_custom_call.1} parent=1 // pred_fallthru
      _
    // Predicated region
    $region18: #{tpu_custom_call.1} parent=1 // pred_check
      _
    $region19: #{tpu_custom_call.1} parent=1 // pred_check_branch
      %32 = sbr.rel (0) target = $region21
    $region20: #{tpu_custom_call.1} parent=1 // pred_region
      _
    $region21: #{tpu_custom_call.1} parent=1 // pred_fallthru
      _
    // Predicated region
    $region22: #{tpu_custom_call.1} parent=1 // pred_check
      _
    $region23: #{tpu_custom_call.1} parent=1 // pred_check_branch
      %34 = sbr.rel (0) target = $region25
    $region24: #{tpu_custom_call.1} parent=1 // pred_region
      %36 = dma.done [#allocation3], 4096
    $region25: #{tpu_custom_call.1} parent=1 // pred_fallthru
      _
    %v37 = vld [vmem:[%s0] sm:$0xf]
    %v38 = vld [vmem:[#allocation2] sm:$0xff]
    %v39 = vld [vmem:[#allocation2 + $0x8] sm:$0xff]
    %v40 = vld [vmem:[#allocation2 + $0x10] sm:$0xff]
    %v41 = vld [vmem:[#allocation2 + $0x18] sm:$0xff]
    %v42 = vld [vmem:[#allocation2 + $0x20] sm:$0xff]
    %v43 = vld [vmem:[#allocation2 + $0x28] sm:$0xff]
    %v44 = vld [vmem:[#allocation2 + $0x30] sm:$0xff]
    %v45 = vld [vmem:[#allocation2 + $0x38] sm:$0xff]
    %v46 = vld [vmem:[#allocation2 + $0x40] sm:$0xff]
    %v47 = vld [vmem:[#allocation2 + $0x48] sm:$0xff]
    %v48 = vld [vmem:[#allocation2 + $0x50] sm:$0xff]
    %v49 = vld [vmem:[#allocation2 + $0x58] sm:$0xff]
    %v50 = vld [vmem:[#allocation2 + $0x60] sm:$0xff]
    %v51 = vld [vmem:[#allocation2 + $0x68] sm:$0xff]
    %v52 = vld [vmem:[#allocation2 + $0x70] sm:$0xff]
    %v53 = vld [vmem:[#allocation2 + $0x78] sm:$0xff]
    %v54 = vld [vmem:[#allocation2 + $0x80] sm:$0xff]
    %v55 = vld [vmem:[#allocation2 + $0x88] sm:$0xff]
    %v56 = vld [vmem:[#allocation2 + $0x90] sm:$0xff]
    %v57 = vld [vmem:[#allocation2 + $0x98] sm:$0xff]
    %v58 = vld [vmem:[#allocation2 + $0xa0] sm:$0xff]
    %v59 = vld [vmem:[#allocation2 + $0xa8] sm:$0xff]
    %v60 = vld [vmem:[#allocation2 + $0xb0] sm:$0xff]
    %v61 = vld [vmem:[#allocation2 + $0xb8] sm:$0xff]
    %v62 = vld [vmem:[#allocation2 + $0xc0] sm:$0xff]
    %v63 = vld [vmem:[#allocation2 + $0xc8] sm:$0xff]
    %v64 = vld [vmem:[#allocation2 + $0xd0] sm:$0xff]
    %v65 = vld [vmem:[#allocation2 + $0xd8] sm:$0xff]
    %v66 = vld [vmem:[#allocation2 + $0xe0] sm:$0xff]
    %v67 = vld [vmem:[#allocation2 + $0xe8] sm:$0xff]
    %v68 = vld [vmem:[#allocation2 + $0xf0] sm:$0xff]
    %v69 = vld [vmem:[#allocation2 + $0xf8] sm:$0xff]
    %v70 = vld [vmem:[%s2] sm:$0x1]
    %v72 = vperm.slane %v70, 0
    %75 = vst [vmem:[#allocation1] ss:$4 sm:$0xff] %v37
    %v76 = vld.sshfl [vmem:[#allocation1] sm:$0xff pattern:$0x73625140]
    %v77 = vld.sshfl [vmem:[#allocation1 + $0x8] sm:$0xff pattern:$0x73625140]
    %80 = vmatpush.msra.mxu0 %v53
    %81 = vmatpush.msra.mxu0 %v52
    %82 = vmatpush.msra.mxu0 %v51
    %83 = vmatpush.msra.mxu0 %v50
    %84 = vmatpush.msra.mxu0 %v49
    %85 = vmatpush.msra.mxu0 %v48
    %86 = vmatpush.msra.mxu0 %v47
    %87 = vmatpush.msra.mxu0 %v46
    %88 = vmatpush.msra.mxu0 %v45
    %89 = vmatpush.msra.mxu0 %v44
    %90 = vmatpush.msra.mxu0 %v43
    %91 = vmatpush.msra.mxu0 %v42
    %92 = vmatpush.msra.mxu0 %v41
    %93 = vmatpush.msra.mxu0 %v40
    %94 = vmatpush.msra.mxu0 %v39
    %95 = vmatpush.msra.mxu0 %v38
    %96 = vmatmul.f32.gmra.mxu0 %v76
    %v97 = vpop.f32.mrf.mxu0
    %v98 = vadd.f32 %v72, %v97
    %99 = vdwg.mxu0
    %100 = vmatpush.msra.mxu0 %v69
    %101 = vmatpush.msra.mxu0 %v68
    %102 = vmatpush.msra.mxu0 %v67
    %103 = vmatpush.msra.mxu0 %v66
    %104 = vmatpush.msra.mxu0 %v65
    %105 = vmatpush.msra.mxu0 %v64
    %106 = vmatpush.msra.mxu0 %v63
    %107 = vmatpush.msra.mxu0 %v62
    %108 = vmatpush.msra.mxu0 %v61
    %109 = vmatpush.msra.mxu0 %v60
    %110 = vmatpush.msra.mxu0 %v59
    %111 = vmatpush.msra.mxu0 %v58
    %112 = vmatpush.msra.mxu0 %v57
    %113 = vmatpush.msra.mxu0 %v56
    %114 = vmatpush.msra.mxu0 %v55
    %115 = vmatpush.msra.mxu0 %v54
    %116 = vmatmul.f32.gmra.mxu0 %v77
    %v117 = vpop.f32.mrf.mxu0
    %v118 = vadd.f32 %v98, %v117
    %119 = vdwg.mxu0
    %v120 = vtanh.pop %v118
    %v121 = vld [vmem:[%s3] sm:$0xff]
    %v122 = vld [vmem:[%s3 + $0x8] sm:$0xff]
    %v123 = vld [vmem:[%s3 + $0x10] sm:$0xff]
    %v124 = vld [vmem:[%s3 + $0x18] sm:$0xff]
    %v125 = vld [vmem:[%s3 + $0x20] sm:$0xff]
    %v126 = vld [vmem:[%s3 + $0x28] sm:$0xff]
    %v127 = vld [vmem:[%s3 + $0x30] sm:$0xff]
    %v128 = vld [vmem:[%s3 + $0x38] sm:$0xff]
    %v129 = vld [vmem:[%s3 + $0x40] sm:$0xff]
    %v130 = vld [vmem:[%s3 + $0x48] sm:$0xff]
    %v131 = vld [vmem:[%s3 + $0x50] sm:$0xff]
    %v132 = vld [vmem:[%s3 + $0x58] sm:$0xff]
    %v133 = vld [vmem:[%s3 + $0x60] sm:$0xff]
    %v134 = vld [vmem:[%s3 + $0x68] sm:$0xff]
    %v135 = vld [vmem:[%s3 + $0x70] sm:$0xff]
    %v136 = vld [vmem:[%s3 + $0x78] sm:$0xff]
    %137 = vmatpush.msra.mxu0 %v136
    %138 = vmatpush.msra.mxu0 %v135
    %139 = vmatpush.msra.mxu0 %v134
    %140 = vmatpush.msra.mxu0 %v133
    %141 = vmatpush.msra.mxu0 %v132
    %142 = vmatpush.msra.mxu0 %v131
    %143 = vmatpush.msra.mxu0 %v130
    %144 = vmatpush.msra.mxu0 %v129
    %145 = vmatpush.msra.mxu0 %v128
    %146 = vmatpush.msra.mxu0 %v127
    %147 = vmatpush.msra.mxu0 %v126
    %148 = vmatpush.msra.mxu0 %v125
    %149 = vmatpush.msra.mxu0 %v124
    %150 = vmatpush.msra.mxu0 %v123
    %151 = vmatpush.msra.mxu0 %v122
    %152 = vmatpush.msra.mxu0 %v121
    %153 = vmatmul.f32.gmra.mxu0 %v120
    %v154 = vpop.f32.mrf.mxu0
    %v155 = vadd.f32 0.0, %v154
    %156 = vdwg.mxu0
    %vm157 = vcmask 58368
    %v158 = vsel %vm157, %v155, -inf
    %159 = vmax.xlane.f32.xlu0 %v158
    %v160 = vpop.xlane.xlu0 %159
    %v161 = vsub.f32 %v155, %v160
    %v162 = vmul.f32 %v161, 1.442695
    %v163 = vpow.pop %v162
    %v164 = vsel %vm157, %v163, 0.0
    %165 = vadd.xlane.f32.xlu0 %v164
    %v166 = vpop.xlane.xlu0 %165
    %v167 = vrcp.pop %v166
    %v168 = vmul.f32 %v166, %v167
    %v169 = vsub.f32 1.0, %v168
    %v170 = vmul.f32 %v167, %v169
    %v171 = vadd.f32 %v167, %v170
    %vm172 = vweird.f32 %v166
    %vm173 = vweird.f32 %v167
    %vm174 = vmor %vm172, %vm173
    %v175 = vsel %vm174, %v167, %v171
    %v176 = vand.u32 2147483647, %v166
    %vm177 = vcmp.eq.f32.partialorder %v176, 8.507059e+37
    %v178 = vand.u32 %v166, 2147483648
    %v179 = vor.u32 1.1754944e-38, %v178
    %v180 = vsel %vm177, %v179, %v175
    %v181 = vmul.f32 %v163, %v180
    %v182 = vld [vmem:[%s4] sm:$0xff]
    %v183 = vld [vmem:[%s4 + $0x8] sm:$0xff]
    %vm184 = vcmask 64512
    %v186 = vsel %vm184, %v181, 0
    %188 = vmatpush.msra.mxu0 0.0
    %189 = vmatpush.msra.mxu0 0.0
    %190 = vmatpush.msra.mxu0 0.0
    %191 = vmatpush.msra.mxu0 0.0
    %192 = vmatpush.msra.mxu0 0.0
    %193 = vmatpush.msra.mxu0 0.0
    %194 = vmatpush.msra.mxu0 0.0
    %195 = vmatpush.msra.mxu0 0.0
    %196 = vmatpush.msra.mxu0 0.0
    %197 = vmatpush.msra.mxu0 0.0
    %198 = vmatpush.msra.mxu0 0.0
    %199 = vmatpush.msra.mxu0 0.0
    %200 = vmatpush.msra.mxu0 0.0
    %201 = vmatpush.msra.mxu0 0.0
    %202 = vmatpush.msra.mxu0 0.0
    %203 = vmatpush.msra.mxu0 %v182
    %204 = vmatmul.f32.gmra.mxu0 %v186
    %v205 = vpop.f32.mrf.mxu0
    %v206 = vadd.f32 0.0, %v205
    %207 = vdwg.mxu0
    %208 = vmatpush.msra.mxu0 0.0
    %209 = vmatpush.msra.mxu0 0.0
    %210 = vmatpush.msra.mxu0 0.0
    %211 = vmatpush.msra.mxu0 0.0
    %212 = vmatpush.msra.mxu0 0.0
    %213 = vmatpush.msra.mxu0 0.0
    %214 = vmatpush.msra.mxu0 0.0
    %215 = vmatpush.msra.mxu0 0.0
    %216 = vmatpush.msra.mxu0 0.0
    %217 = vmatpush.msra.mxu0 0.0
    %218 = vmatpush.msra.mxu0 0.0
    %219 = vmatpush.msra.mxu0 0.0
    %220 = vmatpush.msra.mxu0 0.0
    %221 = vmatpush.msra.mxu0 0.0
    %222 = vmatpush.msra.mxu0 0.0
    %223 = vmatpush.msra.mxu0 %v183
    %224 = vmatmul.f32.gmra.mxu0 %v186
    %v225 = vpop.f32.mrf.mxu0
    %v226 = vadd.f32 0.0, %v225
    %227 = vdwg.mxu0
    %v230 = vrot.slane %v226, 6
    %vm231 = vcmask 1041408
    %v232 = vsel %vm231, %v206, %v230
    %v234 = vmul.f32 %v37, %v232
    %235 = vst [vmem:[#allocation5] sm:$0xf] %v234
    // Predicated region
    $region26: #{tpu_custom_call.1} parent=1 // pred_check
      _
    $region27: #{tpu_custom_call.1} parent=1 // pred_check_branch
      %237 = sbr.rel (0) target = $region29
    $region28: #{tpu_custom_call.1} parent=1 // pred_region
      %239 = vsyncadd [#allocation4], 0
      %s241 = sshll.u32 [#allocation5], 4
      %s242 = int_to_ptr.vmem [resolvable:$true] %s241
      %s243 = sshll.u32 %s5, 4
      %s244 = int_to_ptr.hbm [resolvable:$true] %s243
      %246 = dma.vmem_to_hbm [thread:$0]  %s242, 64, %s244, [#allocation4]
    $region29: #{tpu_custom_call.1} parent=1 // pred_fallthru
      _
    // Predicated region
    $region30: #{tpu_custom_call.1} parent=1 // pred_check
      _
    $region31: #{tpu_custom_call.1} parent=1 // pred_check_branch
      %248 = sbr.rel (0) target = $region33
    $region32: #{tpu_custom_call.1} parent=1 // pred_region
      %250 = dma.done [#allocation4], 64
    $region33: #{tpu_custom_call.1} parent=1 // pred_fallthru
      _
    %251 = vsyncpa [#allocation3], 1
    %252 = vsyncpa [#allocation4], 1

</llo_original>
